<compile_context>
chip_gen: v5e
topology: v5e:2x2
jax: 0.10.0
libtpu: 0.0.40
codegen_flags: <defaults>
</compile_context>

<pallas_src>
import jax
import jax.numpy as jnp
from jax.experimental import pallas as pl
from jax.experimental.pallas import tpu as pltpu


def _round_up(x: int, m: int) -> int:
    return ((x + m - 1) // m) * m


def _vmem_limit_bytes() -> int:
    """Generation-aware scoped-VMEM limit with headroom.

    v5e/v6e (128 MiB physical) -> 96 MiB; v7x (64 MiB/TC) -> 48 MiB;
    unknown / query failure -> 48 MiB (safe on every generation).
    """
    cap = None
    try:
        info = pltpu.get_tpu_info()
        for name in ("vmem_capacity_bytes", "vmem_size_bytes", "vmem_bytes"):
            cap = getattr(info, name, None)
            if cap:
                break
    except Exception:
        cap = None
    if not cap:
        cap = 64 * 1024 * 1024
    return min(int(cap) * 3 // 4, 100 * 1024 * 1024)


def _pick_nk_tile(dim: int):
    """Largest of (512, 256, 128) that evenly divides round_up(dim, 128)."""
    padded = _round_up(max(dim, 1), 128)
    for cand in (512, 256, 128):
        if padded % cand == 0:
            return cand, padded
    return padded, padded  # unreachable: padded is a multiple of 128


def _pick_k_tile(kp_min, tm_max, tn, in_bytes, out_bytes, budget):
    """Prefer tk == full padded K (gk == 1); otherwise the largest chunk that
    keeps the double-buffered tile set inside the VMEM budget."""

    def fits(tk):
        need = 2 * (tm_max * tk + tk * tn) * in_bytes   # x + W, double buffered
        need += 2 * tm_max * tn * out_bytes             # output, double buffered
        need += 2 * tn * 4                              # bias (tiny)
        need += tm_max * tn * 4                         # worst-case f32 scratch
        return need <= budget

    if fits(kp_min):
        return kp_min, kp_min
    for tk in (4096, 2048, 1024, 512, 256, 128):
        if tk < kp_min and fits(tk):
            return tk, _round_up(kp_min, tk)
    return 128, _round_up(kp_min, 128)


# ----------------------------------------------------------------------------
# Kernels
# ----------------------------------------------------------------------------
def _linear_kernel_single_k(x_ref, w_ref, b_ref, o_ref):
    """Whole K reduction in one MXU pass; bias folded into the epilogue."""
    o_ref[...] = (
        jnp.dot(x_ref[...], w_ref[...], preferred_element_type=jnp.float32)
        + b_ref[...]
    ).astype(o_ref.dtype)


def _linear_kernel_acc_out(x_ref, w_ref, b_ref, o_ref):
    """f32 output: accumulate directly into the resident output block.

    The output block is initialized with the broadcast bias at k == 0, so no
    separate accumulator scratch and no epilogue add are needed."""
    @pl.when(pl.program_id(2) == 0)
    def _():
        o_ref[...] = jnp.broadcast_to(b_ref[...], o_ref.shape).astype(o_ref.dtype)

    o_ref[...] += jnp.dot(
        x_ref[...], w_ref[...], preferred_element_type=jnp.float32
    ).astype(o_ref.dtype)


def _linear_kernel_acc_scratch(x_ref, w_ref, b_ref, o_ref, acc_ref):
    """Non-f32 output: f32 VMEM accumulator across the K axis."""
    k = pl.program_id(2)

    @pl.when(k == 0)
    def _():
        acc_ref[...] = jnp.broadcast_to(b_ref[...], acc_ref.shape).astype(jnp.float32)

    acc_ref[...] += jnp.dot(
        x_ref[...], w_ref[...], preferred_element_type=jnp.float32
    )

    @pl.when(k == pl.num_programs(2) - 1)
    def _():
        o_ref[...] = acc_ref[...].astype(o_ref.dtype)


# ----------------------------------------------------------------------------
# Wrapper
# ----------------------------------------------------------------------------
def make_linear(weight, bias, *, compute_dtype=None, tm_max=512):
    """Build forward(x) = x @ weight.T + bias.

    weight: (D_out, D_in), bias: (D_out,).  Weight/bias are transposed, padded
    and (optionally) cast ONCE here and cached in the closure; per call only
    x is (possibly) padded.  compute_dtype=jnp.bfloat16 enables bf16 MXU
    inputs with f32 accumulation (opt-in, changes numerics slightly).
    """
    D_out, D_in = weight.shape
    mxu_dtype = jnp.dtype(compute_dtype) if compute_dtype is not None else jnp.dtype(weight.dtype)
    in_bytes = mxu_dtype.itemsize

    vmem_limit = _vmem_limit_bytes()
    tile_budget = int(vmem_limit * 0.8)

    tn, Np = _pick_nk_tile(D_out)
    Kp_min = _round_up(max(D_in, 1), 128)
    tk, Kp = _pick_k_tile(Kp_min, tm_max, tn, in_bytes, 4, tile_budget)
    gk = Kp // tk
    gn = Np // tn

    # One-time pad + pre-transpose (no per-call HBM passes, no per-step vxpose).
    w_p = jnp.pad(weight.T, ((0, Kp - D_in), (0, Np - D_out))).astype(mxu_dtype)
    b_p = jnp.pad(bias, (0, Np - D_out)).reshape(1, Np).astype(jnp.float32)

    @jax.jit
    def forward(x):
        B, d_in = x.shape
        assert d_in == D_in, "input feature dim mismatch"
        out_dtype = x.dtype

        # ----- M (batch) tiling, per call shape --------------------------
        tm = min(tm_max, _round_up(max(B, 1), 8))
        # Give both v7x TensorCores work when the N grid collapses to 1.
        if gn == 1 and B >= 16 and _round_up(B, tm) // tm < 2:
            tm = _round_up((B + 1) // 2, 8)
        Bp = _round_up(B, tm)
        gm = Bp // tm

        x_p = x
        if Bp != B or Kp != d_in:
            x_p = jnp.pad(x, ((0, Bp - B), (0, Kp - d_in)))
        x_p = x_p.astype(mxu_dtype)

        cost = pl.CostEstimate(
            flops=2 * Bp * Kp * Np,
            transcendentals=0,
            bytes_accessed=(
                gn * Bp * Kp * in_bytes            # x re-read once per N tile
                + gm * Kp * Np * in_bytes          # W re-read once per M tile
                + gm * Np * 4                      # bias
                + Bp * Np * jnp.dtype(out_dtype).itemsize
            ),
        )

        if gk == 1:
            # Single MXU pass over K: no K grid axis, no accumulator.
            grid_spec = pltpu.PrefetchScalarGridSpec(
                num_scalar_prefetch=0,
                grid=(gm, gn),
                in_specs=[
                    pl.BlockSpec((tm, tk), lambda i, j: (i, 0)),   # x
                    pl.BlockSpec((tk, tn), lambda i, j: (0, j)),   # W^T
                    pl.BlockSpec((1, tn), lambda i, j: (0, j)),    # bias
                ],
                out_specs=pl.BlockSpec((tm, tn), lambda i, j: (i, j)),
            )
            kernel = _linear_kernel_single_k
            dim_sem = ("parallel", "parallel")
        else:
            f32_out = jnp.dtype(out_dtype) == jnp.dtype(jnp.float32)
            grid_spec = pltpu.PrefetchScalarGridSpec(
                num_scalar_prefetch=0,
                grid=(gm, gn, gk),
                in_specs=[
                    pl.BlockSpec((tm, tk), lambda i, j, k: (i, k)),   # x
                    pl.BlockSpec((tk, tn), lambda i, j, k: (k, j)),   # W^T
                    pl.BlockSpec((1, tn), lambda i, j, k: (0, j)),    # bias
                ],
                out_specs=pl.BlockSpec((tm, tn), lambda i, j, k: (i, j)),
                scratch_shapes=[] if f32_out else [pltpu.VMEM((tm, tn), jnp.float32)],
            )
            kernel = _linear_kernel_acc_out if f32_out else _linear_kernel_acc_scratch
            dim_sem = ("parallel", "parallel", "arbitrary")

        y_p = pl.pallas_call(
            kernel,
            out_shape=jax.ShapeDtypeStruct((Bp, Np), out_dtype),
            grid_spec=grid_spec,
            compiler_params=pltpu.CompilerParams(
                dimension_semantics=dim_sem,
                vmem_limit_bytes=vmem_limit,
            ),
            cost_estimate=cost,
        )(x_p, w_p, b_p)

        return y_p[:B, :D_out]

    return forward


def linear_forward(x, weight, bias, **kwargs):
    """One-shot convenience wrapper (builds params every call)."""
    return make_linear(weight, bias, **kwargs)(x)


if __name__ == "__main__":
    input_dim = 32
    output_dim = 16
    batch = 8

    key = jax.random.PRNGKey(0)
    kx, kw, kb = jax.random.split(key, 3)

    # PyTorch-style uniform(-1/sqrt(in), 1/sqrt(in)) init, deterministic.
    bound = 1.0 / jnp.sqrt(jnp.float32(input_dim))
    weight = jax.random.uniform(kw, (output_dim, input_dim), jnp.float32,
                                minval=-bound, maxval=bound)
    bias = jax.random.uniform(kb, (output_dim,), jnp.float32,
                              minval=-bound, maxval=bound)
    x = jax.random.normal(kx, (batch, input_dim), jnp.float32)

    forward = make_linear(weight, bias)          # pads/transposes W once
    y = jax.block_until_ready(forward(x))

    # Reference check against plain JAX.
    y_ref = x @ weight.T + bias
    assert y.shape == (batch, output_dim)
    assert jnp.allclose(y, y_ref, atol=1e-5, rtol=1e-5)

    print("KERNEL_OK")
</pallas_src>

<mosaic_0001>
module attributes {stable_mosaic.version = 11 : i64} {
  func.func @_linear_kernel_single_k(%arg0: i32, %arg1: i32, %arg2: memref<8x128xf32, #tpu.memory_space<vmem>>, %arg3: memref<128x128xf32, #tpu.memory_space<vmem>>, %arg4: memref<1x128xf32, #tpu.memory_space<vmem>>, %arg5: memref<8x128xf32, #tpu.memory_space<vmem>>) attributes {dimension_semantics = [#tpu.dimension_semantics<parallel>, #tpu.dimension_semantics<parallel>], iteration_bounds = array<i64: 1, 1>, scalar_prefetch = 0 : i64, scratch_operands = 0 : i64, tpu.core_type = #tpu.core_type<tc>, window_params = [{transform_indices = @transform_0, window_bounds = array<i64: 8, 128>}, {transform_indices = @transform_1, window_bounds = array<i64: 128, 128>}, {transform_indices = @transform_2, window_bounds = array<i64: 1, 128>}, {transform_indices = @transform_3, window_bounds = array<i64: 8, 128>}]} {
    %c0 = arith.constant 0 : index
    %c0_0 = arith.constant 0 : index
    %0 = vector.load %arg2[%c0, %c0_0] : memref<8x128xf32, #tpu.memory_space<vmem>>, vector<8x128xf32>
    %c0_1 = arith.constant 0 : index
    %c0_2 = arith.constant 0 : index
    %1 = vector.load %arg3[%c0_1, %c0_2] : memref<128x128xf32, #tpu.memory_space<vmem>>, vector<128x128xf32>
    %cst = arith.constant dense<0.000000e+00> : vector<8x128xf32>
    %2 = tpu.matmul %0, %1, %cst {dimension_numbers = #tpu.dot_dimension_numbers<[1], [0], [0], [1], [0, 0, 1, 1], [], []>} : vector<8x128xf32>, vector<128x128xf32>, vector<8x128xf32> -> vector<8x128xf32>
    %c0_3 = arith.constant 0 : index
    %c0_4 = arith.constant 0 : index
    %3 = vector.load %arg4[%c0_3, %c0_4] : memref<1x128xf32, #tpu.memory_space<vmem>>, vector<1x128xf32>
    %4 = vector.broadcast %3 : vector<1x128xf32> to vector<8x128xf32>
    %5 = arith.addf %2, %4 : vector<8x128xf32>
    %c0_5 = arith.constant 0 : index
    %c0_6 = arith.constant 0 : index
    %6 = vector.load %arg5[%c0_5, %c0_6] : memref<8x128xf32, #tpu.memory_space<vmem>>, vector<8x128xf32>
    tpu.vector_store %arg5[%c0_5, %c0_6], %5 {strides = array<i32>} : memref<8x128xf32, #tpu.memory_space<vmem>>, vector<8x128xf32>,
    return
  }
  func.func @transform_0(%arg0: i32, %arg1: i32) -> (i32, i32) {
    %c0_i32 = arith.constant 0 : i32
    %c0_i32_0 = arith.constant 0 : i32
    return %arg0, %c0_i32 : i32, i32
  }
  func.func @transform_1(%arg0: i32, %arg1: i32) -> (i32, i32) {
    %c0_i32 = arith.constant 0 : i32
    %c0_i32_0 = arith.constant 0 : i32
    return %c0_i32, %arg1 : i32, i32
  }
  func.func @transform_2(%arg0: i32, %arg1: i32) -> (i32, i32) {
    %c0_i32 = arith.constant 0 : i32
    %c0_i32_0 = arith.constant 0 : i32
    return %c0_i32, %arg1 : i32, i32
  }
  func.func @transform_3(%arg0: i32, %arg1: i32) -> (i32, i32) {
    %c0_i32 = arith.constant 0 : i32
    return %arg0, %arg1 : i32, i32
  }
}

</mosaic_0001>

<llo_original>
// kernel: forward.1
$region0: #{forward.1}
  #allocation0 [shape = 'u32[]', space=smem, size = 0x4, offset = 0x4, fixed_abs, tag = 'smem constant byte address 0x4 - core index']
  #allocation1 [shape = 'u32[72,128]{1,0:T(1,128)}', space=vmem, size = 0x9000, scoped, tag = 'internal scratch']
  %s0 = inlined_call_operand.vmem [shape: f32[8,128], index: 0, kind: input, shape index: {}]
  %s1 = inlined_call_operand.hbm [shape: f32[128,128], index: 1, kind: input, shape index: {}]
  %s2 = inlined_call_operand.vmem [shape: f32[1,128], index: 2, kind: input, shape index: {}]
  %s3 = inlined_call_operand.hbm [shape: f32[8,128], index: 3, kind: output, shape index: {}]
  %s4 = sld [smem:[#allocation0]]
  $region26: #{forward.1} parent=0
    _
  %s6 = ssub.s32 1, %s4
  %s7 = scalar_select 0, %s6, %s4
  $region1: #{forward.1} parent=0
    #allocation2 [shape = 'u8[65536]{0}', space=vmem, size = 0x10000, scoped, tag = 'input window, operand 1, single buffered']
    #allocation3 [shape = 's32[1]{0}', space=sflag, size = 0x4, scoped, tag = 'scoped memory for forward.1']
    #allocation4 [shape = 's32[1]{0}', space=sflag, size = 0x4, scoped, tag = 'scoped memory for forward.1']
    #allocation5 [shape = 'u8[4096]{0}', space=vmem, size = 0x1000, scoped, tag = 'output window, operand 0, single buffered']
    %8 = vsyncpa [#allocation3], 0
    %9 = vsyncpa [#allocation4], 0
    // Predicated region
    $region2: #{forward.1} parent=1 // pred_check
      _
    $region3: #{forward.1} parent=1 // pred_check_branch
      %11 = sbr.rel (0) target = $region5
    $region4: #{forward.1} parent=1 // pred_region
      _
    $region5: #{forward.1} parent=1 // pred_fallthru
      _
    // Predicated region
    $region6: #{forward.1} parent=1 // pred_check
      _
    $region7: #{forward.1} parent=1 // pred_check_branch
      %13 = sbr.rel (0) target = $region9
    $region8: #{forward.1} parent=1 // pred_region
      %15 = vsyncadd [#allocation3], 0
      %s16 = sshll.u32 %s1, 4
      %s17 = int_to_ptr.hbm [resolvable:$true] %s16
      %s18 = sshll.u32 [#allocation2], 4
      %s19 = int_to_ptr.vmem [resolvable:$true] %s18
      %24 = dma.hbm_to_vmem [thread:$0]  %s17, 2048, %s19, [#allocation3], 128, 128, 8
    $region9: #{forward.1} parent=1 // pred_fallthru
      _
    // Predicated region
    $region10: #{forward.1} parent=1 // pred_check
      _
    $region11: #{forward.1} parent=1 // pred_check_branch
      %26 = sbr.rel (0) target = $region13
    $region12: #{forward.1} parent=1 // pred_region
      _
    $region13: #{forward.1} parent=1 // pred_fallthru
      _
    // Predicated region
    $region14: #{forward.1} parent=1 // pred_check
      _
    $region15: #{forward.1} parent=1 // pred_check_branch
      %28 = sbr.rel (0) target = $region17
    $region16: #{forward.1} parent=1 // pred_region
      %30 = dma.done [#allocation3], 2048
    $region17: #{forward.1} parent=1 // pred_fallthru
      _
    %v31 = vld [vmem:[%s0] sm:$0xff]
    %v32 = vld [vmem:[#allocation2] sm:$0xff]
    %v33 = vld [vmem:[#allocation2 + $0x8] sm:$0xff]
    %v34 = vld [vmem:[#allocation2 + $0x10] sm:$0xff]
    %v35 = vld [vmem:[#allocation2 + $0x18] sm:$0xff]
    %v36 = vld [vmem:[#allocation2 + $0x20] sm:$0xff]
    %v37 = vld [vmem:[#allocation2 + $0x28] sm:$0xff]
    %v38 = vld [vmem:[#allocation2 + $0x30] sm:$0xff]
    %v39 = vld [vmem:[#allocation2 + $0x38] sm:$0xff]
    %v40 = vld [vmem:[#allocation2 + $0x40] sm:$0xff]
    %v41 = vld [vmem:[#allocation2 + $0x48] sm:$0xff]
    %v42 = vld [vmem:[#allocation2 + $0x50] sm:$0xff]
    %v43 = vld [vmem:[#allocation2 + $0x58] sm:$0xff]
    %v44 = vld [vmem:[#allocation2 + $0x60] sm:$0xff]
    %v45 = vld [vmem:[#allocation2 + $0x68] sm:$0xff]
    %v46 = vld [vmem:[#allocation2 + $0x70] sm:$0xff]
    %v47 = vld [vmem:[#allocation2 + $0x78] sm:$0xff]
    %v48 = vld [vmem:[%s2] sm:$0x1]
    %v50 = vperm.slane %v48, 0
    %52 = vmatpush.msra.mxu0 %v47
    %53 = vmatpush.msra.mxu0 %v46
    %54 = vmatpush.msra.mxu0 %v45
    %55 = vmatpush.msra.mxu0 %v44
    %56 = vmatpush.msra.mxu0 %v43
    %57 = vmatpush.msra.mxu0 %v42
    %58 = vmatpush.msra.mxu0 %v41
    %59 = vmatpush.msra.mxu0 %v40
    %60 = vmatpush.msra.mxu0 %v39
    %61 = vmatpush.msra.mxu0 %v38
    %62 = vmatpush.msra.mxu0 %v37
    %63 = vmatpush.msra.mxu0 %v36
    %64 = vmatpush.msra.mxu0 %v35
    %65 = vmatpush.msra.mxu0 %v34
    %66 = vmatpush.msra.mxu0 %v33
    %67 = vmatpush.msra.mxu0 %v32
    %68 = vmatmul.f32.gmra.mxu0 %v31
    %v69 = vpop.f32.mrf.mxu0
    %v70 = vadd.f32 %v50, %v69
    %71 = vdwg.mxu0
    %72 = vst [vmem:[#allocation5] sm:$0xff] %v70
    // Predicated region
    $region18: #{forward.1} parent=1 // pred_check
      _
    $region19: #{forward.1} parent=1 // pred_check_branch
      %74 = sbr.rel (0) target = $region21
    $region20: #{forward.1} parent=1 // pred_region
      %76 = vsyncadd [#allocation4], 0
      %s78 = sshll.u32 [#allocation5], 4
      %s79 = int_to_ptr.vmem [resolvable:$true] %s78
      %s80 = sshll.u32 %s3, 4
      %s81 = int_to_ptr.hbm [resolvable:$true] %s80
      %83 = dma.vmem_to_hbm [thread:$0]  %s79, 128, %s81, [#allocation4]
    $region21: #{forward.1} parent=1 // pred_fallthru
      _
    // Predicated region
    $region22: #{forward.1} parent=1 // pred_check
      _
    $region23: #{forward.1} parent=1 // pred_check_branch
      %85 = sbr.rel (0) target = $region25
    $region24: #{forward.1} parent=1 // pred_region
      %87 = dma.done [#allocation4], 128
    $region25: #{forward.1} parent=1 // pred_fallthru
      _
    %88 = vsyncpa [#allocation3], 1
    %89 = vsyncpa [#allocation4], 1

</llo_original>
